<compile_context>
chip_gen: v7x
topology: tpu7x:2x2x1
jax: 0.10.0
libtpu: 0.0.40
codegen_flags: <defaults>
</compile_context>

<pallas_src>
import numpy as np

import jax
import jax.numpy as jnp
from jax.experimental import pallas as pl
from jax.experimental.pallas import tpu as pltpu


# --------------------------------------------------------------------------- #
# Kernel
# --------------------------------------------------------------------------- #
def rgcn_cell_kernel(x_ref, s_ref, adjt_ref,
                     wxz_ref, wsz_ref, wxr_ref, wsr_ref,
                     wus_ref, wux_ref,
                     bz_ref, br_ref, bu_ref,
                     out_ref):
    """One grid step: G batch elements folded into lanes.

    x_ref    : (N, G*Ci)   bf16  inputs, lane = b*Ci + c
    s_ref    : (N, G*Co)   bf16  state,  lane = b*Co + c
    adjt_ref : (N, N)      bf16  adj^T (pre-transposed in wrapper)
    w*_ref   : block-diagonal (G*, G*) bf16 weight pieces
    b*_ref   : (1, G*Co)   f32   tiled biases
    out_ref  : (N, G*Co)
    """
    f32 = jnp.float32
    adj_t = adjt_ref[...]                     # (N, N)
    x = x_ref[...]                            # (N, G*Ci)
    s = s_ref[...]                            # (N, G*Co)
    cd = x.dtype                              # matmul operand dtype (bf16)

    # --- shared aggregation: adj^T @ X  (computed once, reused by both GCNs) ---
    agg_x = jnp.dot(adj_t, x, preferred_element_type=f32)     # (N, G*Ci) f32
    agg_s = jnp.dot(adj_t, s, preferred_element_type=f32)     # (N, G*Co) f32
    agg_x_c = agg_x.astype(cd)
    agg_s_c = agg_s.astype(cd)

    # --- gate GCN with split weights (no concatenate): update z, reset r ---
    z = jax.nn.sigmoid(
        jnp.dot(agg_x_c, wxz_ref[...], preferred_element_type=f32)
        + jnp.dot(agg_s_c, wsz_ref[...], preferred_element_type=f32)
        + bz_ref[...])                                         # (N, G*Co) f32
    r = jax.nn.sigmoid(
        jnp.dot(agg_x_c, wxr_ref[...], preferred_element_type=f32)
        + jnp.dot(agg_s_c, wsr_ref[...], preferred_element_type=f32)
        + br_ref[...])                                         # (N, G*Co) f32

    # --- update GCN on [r*s, x]; the x-part reuses agg_x ---
    s_f = s.astype(f32)
    rs_c = (r * s_f).astype(cd)                                # (N, G*Co)
    agg_rs_c = jnp.dot(adj_t, rs_c, preferred_element_type=f32).astype(cd)
    h_hat = jnp.tanh(
        jnp.dot(agg_rs_c, wus_ref[...], preferred_element_type=f32)
        + jnp.dot(agg_x_c, wux_ref[...], preferred_element_type=f32)
        + bu_ref[...])                                         # (N, G*Co) f32

    # --- GRU-style combine (f32 VPU math) ---
    h = (1.0 - z) * s_f + z * h_hat
    out_ref[...] = h.astype(out_ref.dtype)


# --------------------------------------------------------------------------- #
# Wrapper: layout plumbing (batch lane-folding, weight splitting, block-diag),
# BlockSpecs, cost estimate, VMEM budget.
# --------------------------------------------------------------------------- #
def _nbytes(a):
    return int(a.size) * np.dtype(a.dtype).itemsize


def rgcn_cell(inputs, state, adj, w_gate, b_gate, w_update, b_update, *,
              out_dim, matmul_dtype=jnp.bfloat16, batch_block=None):
    B, N, Ci = inputs.shape
    Co = out_dim
    D = Ci + Co
    assert state.shape == (B, N, Co)
    assert adj.shape == (N, N)
    assert w_gate.shape == (D, 2 * Co)
    assert w_update.shape == (D, Co)

    f32 = jnp.float32
    cd = matmul_dtype
    out_dtype = inputs.dtype

    # --- choose how many batch elements to fold into lanes per grid step ------
    if batch_block is None:
        want = max(1, int(pl.cdiv(128, max(Co, 1))))   # aim for >=128-wide lanes
        g = min(B, want)
        while B % g:                                   # largest divisor of B <= want
            g -= 1
        batch_block = g
    G = int(batch_block)
    assert B % G == 0, "batch_block must divide the batch size"
    nb = B // G

    # --- wrapper-side layout plumbing (done once, not per grid step) ----------
    # lane-fold the batch: (nb, N, G*C), lane index = b_in_group * C + channel
    x_l = (inputs.reshape(nb, G, N, Ci).transpose(0, 2, 1, 3)
           .reshape(nb, N, G * Ci).astype(cd))
    s_l = (state.reshape(nb, G, N, Co).transpose(0, 2, 1, 3)
           .reshape(nb, N, G * Co).astype(cd))
    adj_t = adj.T.astype(cd)                            # aggregation is adj^T @ X

    bg = jnp.reshape(b_gate, (-1,)).astype(f32)         # (2*Co,)
    bu = jnp.reshape(b_update, (-1,)).astype(f32)       # (Co,)

    # split weights: gate rows [x | s], cols [z | r]; update rows [r*s | x]
    wxz, wxr = w_gate[:Ci, :Co], w_gate[:Ci, Co:]
    wsz, wsr = w_gate[Ci:, :Co], w_gate[Ci:, Co:]
    wus, wux = w_update[:Co, :], w_update[Co:, :]
    bz, br = bg[:Co], bg[Co:]

    def bdiag(w):
        # (p, q) -> (G*p, G*q) block-diagonal so per-batch channels stay separated
        p, q = w.shape
        eye = jnp.eye(G, dtype=w.dtype)
        return (eye[:, None, :, None] * w[None, :, None, :]).reshape(G * p, G * q)

    wxz_l = bdiag(wxz).astype(cd)
    wsz_l = bdiag(wsz).astype(cd)
    wxr_l = bdiag(wxr).astype(cd)
    wsr_l = bdiag(wsr).astype(cd)
    wus_l = bdiag(wus).astype(cd)
    wux_l = bdiag(wux).astype(cd)
    bz_l = jnp.tile(bz, G)[None, :]                     # (1, G*Co) f32
    br_l = jnp.tile(br, G)[None, :]
    bu_l = jnp.tile(bu, G)[None, :]

    # --- cost estimate (advisory, helps XLA schedule the surrounding loop) ----
    agg_flops = 2 * B * N * N * (Ci + 2 * Co)            # 3 aggregations
    w_flops = 6 * B * G * N * Co * (Ci + Co)             # block-diag weight matmuls
    elem_flops = 10 * B * N * Co                         # gating elementwise
    in_bytes = sum(_nbytes(a) for a in
                   (x_l, s_l, adj_t, wxz_l, wsz_l, wxr_l, wsr_l, wus_l, wux_l,
                    bz_l, br_l, bu_l))
    out_bytes = B * N * Co * np.dtype(out_dtype).itemsize
    cost = pl.CostEstimate(flops=int(agg_flops + w_flops + elem_flops),
                           transcendentals=int(3 * B * N * Co),
                           bytes_accessed=int(in_bytes + out_bytes))

    # --- VMEM budget: raise the scoped limit only when actually needed --------
    itemsize_cd = np.dtype(cd).itemsize
    shared_bytes = (_nbytes(adj_t)
                    + sum(_nbytes(a) for a in (wxz_l, wsz_l, wxr_l, wsr_l,
                                               wus_l, wux_l, bz_l, br_l, bu_l)))
    block_bytes = ((N * G * Ci + N * G * Co) * itemsize_cd
                   + N * G * Co * np.dtype(out_dtype).itemsize)
    vmem_est = shared_bytes + 2 * block_bytes            # double-buffered blocks
    vmem_limit = None
    if vmem_est > 30 * (1 << 20):
        # v6e has 128 MiB physical VMEM; v7x only 64 MiB -- see TODO(synk) above.
        vmem_limit = int(min(vmem_est * 2, 100 * (1 << 20)))

    full2d = lambda a: pl.BlockSpec(a.shape, lambda i: (0, 0))

    out_l = pl.pallas_call(
        rgcn_cell_kernel,
        out_shape=jax.ShapeDtypeStruct((nb, N, G * Co), out_dtype),
        grid=(nb,),
        in_specs=[
            pl.BlockSpec((None, N, G * Ci), lambda i: (i, 0, 0)),   # x (lane-folded)
            pl.BlockSpec((None, N, G * Co), lambda i: (i, 0, 0)),   # s (lane-folded)
            full2d(adj_t),                                          # adj^T (shared)
            full2d(wxz_l), full2d(wsz_l), full2d(wxr_l), full2d(wsr_l),
            full2d(wus_l), full2d(wux_l),
            full2d(bz_l), full2d(br_l), full2d(bu_l),
        ],
        out_specs=pl.BlockSpec((None, N, G * Co), lambda i: (i, 0, 0)),
        compiler_params=pltpu.CompilerParams(
            dimension_semantics=("parallel",),
            vmem_limit_bytes=vmem_limit),
        cost_estimate=cost,
    )(x_l, s_l, adj_t, wxz_l, wsz_l, wxr_l, wsr_l, wus_l, wux_l, bz_l, br_l, bu_l)

    # un-fold the lanes back to (B, N, Co)
    return (out_l.reshape(nb, N, G, Co).transpose(0, 2, 1, 3).reshape(B, N, Co))


# --------------------------------------------------------------------------- #
# Pure-JAX reference (mirrors the PyTorch math; optionally mirrors the kernel's
# bf16 operand rounding so a tight tolerance can be used).
# --------------------------------------------------------------------------- #
def _rgcn_ref(inputs, state, adj, w_gate, b_gate, w_update, b_update, *,
              out_dim, matmul_dtype=None):
    f32 = jnp.float32
    hp = jax.lax.Precision.HIGHEST
    if matmul_dtype is None:
        q = lambda a: a.astype(f32)
    else:
        q = lambda a: a.astype(matmul_dtype).astype(f32)

    Ci = inputs.shape[-1]
    Co = out_dim
    x, s, adj_q = q(inputs), q(state), q(adj)
    wg, wu = q(w_gate), q(w_update)
    bg = jnp.reshape(b_gate, (-1,)).astype(f32)
    bu = jnp.reshape(b_update, (-1,)).astype(f32)

    def agg(v):          # adj^T @ v, batched over the leading dim
        return q(jnp.einsum('nm,bnc->bmc', adj_q, v, precision=hp))

    def wmm(a, w):
        return jnp.einsum('bnc,cd->bnd', a, w, precision=hp)

    ax, as_ = agg(x), agg(s)
    z = jax.nn.sigmoid(wmm(ax, wg[:Ci, :Co]) + wmm(as_, wg[Ci:, :Co]) + bg[:Co])
    r = jax.nn.sigmoid(wmm(ax, wg[:Ci, Co:]) + wmm(as_, wg[Ci:, Co:]) + bg[Co:])
    ars = agg(q(r * s))
    h_hat = jnp.tanh(wmm(ars, wu[:Co, :]) + wmm(ax, wu[Co:, :]) + bu)
    return (1.0 - z) * s + z * h_hat


# --------------------------------------------------------------------------- #
# Demo / self-test
# --------------------------------------------------------------------------- #
if __name__ == "__main__":
    B, N = 2, 16                 # batch, node_num
    input_dim, out_dim = 4, 8
    D = input_dim + out_dim      # GCN in_dim

    key = jax.random.PRNGKey(0)
    k_in, k_st, k_adj, k_wg, k_bg, k_wu, k_bu = jax.random.split(key, 7)

    inputs = jax.random.normal(k_in, (B, N, input_dim), dtype=jnp.float32)
    state = jax.random.normal(k_st, (B, N, out_dim), dtype=jnp.float32)
    adj = jax.random.uniform(k_adj, (N, N), dtype=jnp.float32)

    # Deterministic synthetic parameters (the PyTorch module leaves them uninitialized).
    w_gate = jax.random.normal(k_wg, (D, 2 * out_dim), dtype=jnp.float32) * 0.1
    b_gate = jax.random.normal(k_bg, (2 * out_dim,), dtype=jnp.float32) * 0.1
    w_upd = jax.random.normal(k_wu, (D, out_dim), dtype=jnp.float32) * 0.1
    b_upd = jax.random.normal(k_bu, (out_dim,), dtype=jnp.float32) * 0.1

    # Run the fused kernel (batch fully folded into lanes -> a single grid step).
    h = rgcn_cell(inputs, state, adj, w_gate, b_gate, w_upd, b_upd,
                  out_dim=out_dim, matmul_dtype=jnp.bfloat16)
    h = jax.block_until_ready(h)
    assert h.shape == (B, N, out_dim)

    # Tight check vs a reference applying the same bf16 operand rounding.
    h_q = _rgcn_ref(inputs, state, adj, w_gate, b_gate, w_upd, b_upd,
                    out_dim=out_dim, matmul_dtype=jnp.bfloat16)
    assert jnp.allclose(h, h_q, atol=1e-3, rtol=1e-3), \
        float(jnp.max(jnp.abs(h - h_q)))

    # Sanity check vs the pure-f32 reference (original module semantics); the only
    # difference is bf16 quantization of the matmul operands.
    h_f = _rgcn_ref(inputs, state, adj, w_gate, b_gate, w_upd, b_upd,
                    out_dim=out_dim, matmul_dtype=None)
    assert jnp.allclose(h, h_f, atol=5e-2, rtol=5e-2), \
        float(jnp.max(jnp.abs(h - h_f)))

    # Also exercise the multi-step grid path (one batch element per step).
    h2 = rgcn_cell(inputs, state, adj, w_gate, b_gate, w_upd, b_upd,
                   out_dim=out_dim, matmul_dtype=jnp.bfloat16, batch_block=1)
    h2 = jax.block_until_ready(h2)
    assert jnp.allclose(h2, h_q, atol=1e-3, rtol=1e-3), \
        float(jnp.max(jnp.abs(h2 - h_q)))

    print("KERNEL_OK")
</pallas_src>

<mosaic_0001>
module attributes {stable_mosaic.version = 11 : i64} {
  func.func @rgcn_cell_kernel(%arg0: i32, %arg1: memref<1x16x8xbf16, #tpu.memory_space<vmem>>, %arg2: memref<1x16x16xbf16, #tpu.memory_space<vmem>>, %arg3: memref<16x16xbf16, #tpu.memory_space<vmem>>, %arg4: memref<8x16xbf16, #tpu.memory_space<vmem>>, %arg5: memref<16x16xbf16, #tpu.memory_space<vmem>>, %arg6: memref<8x16xbf16, #tpu.memory_space<vmem>>, %arg7: memref<16x16xbf16, #tpu.memory_space<vmem>>, %arg8: memref<16x16xbf16, #tpu.memory_space<vmem>>, %arg9: memref<8x16xbf16, #tpu.memory_space<vmem>>, %arg10: memref<1x16xf32, #tpu.memory_space<vmem>>, %arg11: memref<1x16xf32, #tpu.memory_space<vmem>>, %arg12: memref<1x16xf32, #tpu.memory_space<vmem>>, %arg13: memref<1x16x16xf32, #tpu.memory_space<vmem>>) attributes {dimension_semantics = [#tpu.dimension_semantics<parallel>], iteration_bounds = array<i64: 1>, scalar_prefetch = 0 : i64, scratch_operands = 0 : i64, tpu.core_type = #tpu.core_type<tc>, window_params = [{transform_indices = @transform_0, window_bounds = array<i64: 1, 16, 8>}, {transform_indices = @transform_1, window_bounds = array<i64: 1, 16, 16>}, {pipeline_mode = #tpu.pipeline_mode<synchronous>, transform_indices = @transform_2, window_bounds = array<i64: 16, 16>}, {pipeline_mode = #tpu.pipeline_mode<synchronous>, transform_indices = @transform_3, window_bounds = array<i64: 8, 16>}, {pipeline_mode = #tpu.pipeline_mode<synchronous>, transform_indices = @transform_4, window_bounds = array<i64: 16, 16>}, {pipeline_mode = #tpu.pipeline_mode<synchronous>, transform_indices = @transform_5, window_bounds = array<i64: 8, 16>}, {pipeline_mode = #tpu.pipeline_mode<synchronous>, transform_indices = @transform_6, window_bounds = array<i64: 16, 16>}, {pipeline_mode = #tpu.pipeline_mode<synchronous>, transform_indices = @transform_7, window_bounds = array<i64: 16, 16>}, {pipeline_mode = #tpu.pipeline_mode<synchronous>, transform_indices = @transform_8, window_bounds = array<i64: 8, 16>}, {pipeline_mode = #tpu.pipeline_mode<synchronous>, transform_indices = @transform_9, window_bounds = array<i64: 1, 16>}, {pipeline_mode = #tpu.pipeline_mode<synchronous>, transform_indices = @transform_10, window_bounds = array<i64: 1, 16>}, {pipeline_mode = #tpu.pipeline_mode<synchronous>, transform_indices = @transform_11, window_bounds = array<i64: 1, 16>}, {transform_indices = @transform_12, window_bounds = array<i64: 1, 16, 16>}]} {
    %c0 = arith.constant 0 : index
    %c0_0 = arith.constant 0 : index
    %0 = vector.load %arg3[%c0, %c0_0] : memref<16x16xbf16, #tpu.memory_space<vmem>>, vector<16x16xbf16>
    %c0_1 = arith.constant 0 : index
    %c0_2 = arith.constant 0 : index
    %c0_3 = arith.constant 0 : index
    %1 = vector.load %arg1[%c0_1, %c0_2, %c0_3] : memref<1x16x8xbf16, #tpu.memory_space<vmem>>, vector<1x16x8xbf16>
    %2 = vector.shape_cast %1 : vector<1x16x8xbf16> to vector<16x8xbf16>
    %c0_4 = arith.constant 0 : index
    %c0_5 = arith.constant 0 : index
    %c0_6 = arith.constant 0 : index
    %3 = vector.load %arg2[%c0_4, %c0_5, %c0_6] : memref<1x16x16xbf16, #tpu.memory_space<vmem>>, vector<1x16x16xbf16>
    %4 = vector.shape_cast %3 : vector<1x16x16xbf16> to vector<16x16xbf16>
    %cst = arith.constant dense<0.000000e+00> : vector<16x8xf32>
    %5 = tpu.matmul %0, %2, %cst {dimension_numbers = #tpu.dot_dimension_numbers<[1], [0], [0], [1], [0, 0, 1, 1], [], []>} : vector<16x16xbf16>, vector<16x8xbf16>, vector<16x8xf32> -> vector<16x8xf32>
    %cst_7 = arith.constant dense<0.000000e+00> : vector<16x16xf32>
    %6 = tpu.matmul %0, %4, %cst_7 {dimension_numbers = #tpu.dot_dimension_numbers<[1], [0], [0], [1], [0, 0, 1, 1], [], []>} : vector<16x16xbf16>, vector<16x16xbf16>, vector<16x16xf32> -> vector<16x16xf32>
    %7 = arith.truncf %5 : vector<16x8xf32> to vector<16x8xbf16>
    %8 = arith.truncf %6 : vector<16x16xf32> to vector<16x16xbf16>
    %c0_8 = arith.constant 0 : index
    %c0_9 = arith.constant 0 : index
    %9 = vector.load %arg4[%c0_8, %c0_9] : memref<8x16xbf16, #tpu.memory_space<vmem>>, vector<8x16xbf16>
    %cst_10 = arith.constant dense<0.000000e+00> : vector<16x16xf32>
    %10 = tpu.matmul %7, %9, %cst_10 {dimension_numbers = #tpu.dot_dimension_numbers<[1], [0], [0], [1], [0, 0, 1, 1], [], []>} : vector<16x8xbf16>, vector<8x16xbf16>, vector<16x16xf32> -> vector<16x16xf32>
    %c0_11 = arith.constant 0 : index
    %c0_12 = arith.constant 0 : index
    %11 = vector.load %arg5[%c0_11, %c0_12] : memref<16x16xbf16, #tpu.memory_space<vmem>>, vector<16x16xbf16>
    %cst_13 = arith.constant dense<0.000000e+00> : vector<16x16xf32>
    %12 = tpu.matmul %8, %11, %cst_13 {dimension_numbers = #tpu.dot_dimension_numbers<[1], [0], [0], [1], [0, 0, 1, 1], [], []>} : vector<16x16xbf16>, vector<16x16xbf16>, vector<16x16xf32> -> vector<16x16xf32>
    %13 = arith.addf %10, %12 : vector<16x16xf32>
    %c0_14 = arith.constant 0 : index
    %c0_15 = arith.constant 0 : index
    %14 = vector.load %arg10[%c0_14, %c0_15] : memref<1x16xf32, #tpu.memory_space<vmem>>, vector<1x16xf32>
    %15 = vector.broadcast %14 : vector<1x16xf32> to vector<16x16xf32>
    %16 = arith.addf %13, %15 : vector<16x16xf32>
    %17 = arith.negf %16 : vector<16x16xf32>
    %18 = math.exp %17 : vector<16x16xf32>
    %cst_16 = arith.constant 1.000000e+00 : f32
    %19 = vector.broadcast %cst_16 : f32 to vector<16x16xf32>
    %20 = arith.addf %19, %18 : vector<16x16xf32>
    %21 = arith.divf %19, %20 : vector<16x16xf32>
    %c0_17 = arith.constant 0 : index
    %c0_18 = arith.constant 0 : index
    %22 = vector.load %arg6[%c0_17, %c0_18] : memref<8x16xbf16, #tpu.memory_space<vmem>>, vector<8x16xbf16>
    %cst_19 = arith.constant dense<0.000000e+00> : vector<16x16xf32>
    %23 = tpu.matmul %7, %22, %cst_19 {dimension_numbers = #tpu.dot_dimension_numbers<[1], [0], [0], [1], [0, 0, 1, 1], [], []>} : vector<16x8xbf16>, vector<8x16xbf16>, vector<16x16xf32> -> vector<16x16xf32>
    %c0_20 = arith.constant 0 : index
    %c0_21 = arith.constant 0 : index
    %24 = vector.load %arg7[%c0_20, %c0_21] : memref<16x16xbf16, #tpu.memory_space<vmem>>, vector<16x16xbf16>
    %cst_22 = arith.constant dense<0.000000e+00> : vector<16x16xf32>
    %25 = tpu.matmul %8, %24, %cst_22 {dimension_numbers = #tpu.dot_dimension_numbers<[1], [0], [0], [1], [0, 0, 1, 1], [], []>} : vector<16x16xbf16>, vector<16x16xbf16>, vector<16x16xf32> -> vector<16x16xf32>
    %26 = arith.addf %23, %25 : vector<16x16xf32>
    %c0_23 = arith.constant 0 : index
    %c0_24 = arith.constant 0 : index
    %27 = vector.load %arg11[%c0_23, %c0_24] : memref<1x16xf32, #tpu.memory_space<vmem>>, vector<1x16xf32>
    %28 = vector.broadcast %27 : vector<1x16xf32> to vector<16x16xf32>
    %29 = arith.addf %26, %28 : vector<16x16xf32>
    %30 = arith.negf %29 : vector<16x16xf32>
    %31 = math.exp %30 : vector<16x16xf32>
    %cst_25 = arith.constant 1.000000e+00 : f32
    %32 = vector.broadcast %cst_25 : f32 to vector<16x16xf32>
    %33 = arith.addf %32, %31 : vector<16x16xf32>
    %34 = arith.divf %32, %33 : vector<16x16xf32>
    %35 = arith.extf %4 : vector<16x16xbf16> to vector<16x16xf32>
    %36 = arith.mulf %34, %35 : vector<16x16xf32>
    %37 = arith.truncf %36 : vector<16x16xf32> to vector<16x16xbf16>
    %cst_26 = arith.constant dense<0.000000e+00> : vector<16x16xf32>
    %38 = tpu.matmul %0, %37, %cst_26 {dimension_numbers = #tpu.dot_dimension_numbers<[1], [0], [0], [1], [0, 0, 1, 1], [], []>} : vector<16x16xbf16>, vector<16x16xbf16>, vector<16x16xf32> -> vector<16x16xf32>
    %39 = arith.truncf %38 : vector<16x16xf32> to vector<16x16xbf16>
    %c0_27 = arith.constant 0 : index
    %c0_28 = arith.constant 0 : index
    %40 = vector.load %arg8[%c0_27, %c0_28] : memref<16x16xbf16, #tpu.memory_space<vmem>>, vector<16x16xbf16>
    %cst_29 = arith.constant dense<0.000000e+00> : vector<16x16xf32>
    %41 = tpu.matmul %39, %40, %cst_29 {dimension_numbers = #tpu.dot_dimension_numbers<[1], [0], [0], [1], [0, 0, 1, 1], [], []>} : vector<16x16xbf16>, vector<16x16xbf16>, vector<16x16xf32> -> vector<16x16xf32>
    %c0_30 = arith.constant 0 : index
    %c0_31 = arith.constant 0 : index
    %42 = vector.load %arg9[%c0_30, %c0_31] : memref<8x16xbf16, #tpu.memory_space<vmem>>, vector<8x16xbf16>
    %cst_32 = arith.constant dense<0.000000e+00> : vector<16x16xf32>
    %43 = tpu.matmul %7, %42, %cst_32 {dimension_numbers = #tpu.dot_dimension_numbers<[1], [0], [0], [1], [0, 0, 1, 1], [], []>} : vector<16x8xbf16>, vector<8x16xbf16>, vector<16x16xf32> -> vector<16x16xf32>
    %44 = arith.addf %41, %43 : vector<16x16xf32>
    %c0_33 = arith.constant 0 : index
    %c0_34 = arith.constant 0 : index
    %45 = vector.load %arg12[%c0_33, %c0_34] : memref<1x16xf32, #tpu.memory_space<vmem>>, vector<1x16xf32>
    %46 = vector.broadcast %45 : vector<1x16xf32> to vector<16x16xf32>
    %47 = arith.addf %44, %46 : vector<16x16xf32>
    %48 = math.tanh %47 : vector<16x16xf32>
    %cst_35 = arith.constant 1.000000e+00 : f32
    %49 = vector.broadcast %cst_35 : f32 to vector<16x16xf32>
    %50 = arith.subf %49, %21 : vector<16x16xf32>
    %51 = arith.mulf %50, %35 : vector<16x16xf32>
    %52 = arith.mulf %21, %48 : vector<16x16xf32>
    %53 = arith.addf %51, %52 : vector<16x16xf32>
    %c0_36 = arith.constant 0 : index
    %c0_37 = arith.constant 0 : index
    %c0_38 = arith.constant 0 : index
    %54 = vector.load %arg13[%c0_36, %c0_37, %c0_38] : memref<1x16x16xf32, #tpu.memory_space<vmem>>, vector<1x16x16xf32>
    %55 = vector.shape_cast %54 : vector<1x16x16xf32> to vector<16x16xf32>
    %56 = vector.shape_cast %53 : vector<16x16xf32> to vector<1x16x16xf32>
    tpu.vector_store %arg13[%c0_36, %c0_37, %c0_38], %56 {strides = array<i32>} : memref<1x16x16xf32, #tpu.memory_space<vmem>>, vector<1x16x16xf32>,
    return
  }
  func.func @transform_0(%arg0: i32) -> (i32, i32, i32) {
    %c0_i32 = arith.constant 0 : i32
    %c0_i32_0 = arith.constant 0 : i32
    %c0_i32_1 = arith.constant 0 : i32
    return %arg0, %c0_i32, %c0_i32_0 : i32, i32, i32
  }
  func.func @transform_1(%arg0: i32) -> (i32, i32, i32) {
    %c0_i32 = arith.constant 0 : i32
    %c0_i32_0 = arith.constant 0 : i32
    %c0_i32_1 = arith.constant 0 : i32
    return %arg0, %c0_i32, %c0_i32_0 : i32, i32, i32
  }
  func.func @transform_2(%arg0: i32) -> (i32, i32) {
    %c0_i32 = arith.constant 0 : i32
    %c0_i32_0 = arith.constant 0 : i32
    %c0_i32_1 = arith.constant 0 : i32
    return %c0_i32, %c0_i32_0 : i32, i32
  }
  func.func @transform_3(%arg0: i32) -> (i32, i32) {
    %c0_i32 = arith.constant 0 : i32
    %c0_i32_0 = arith.constant 0 : i32
    %c0_i32_1 = arith.constant 0 : i32
    return %c0_i32, %c0_i32_0 : i32, i32
  }
  func.func @transform_4(%arg0: i32) -> (i32, i32) {
    %c0_i32 = arith.constant 0 : i32
    %c0_i32_0 = arith.constant 0 : i32
    %c0_i32_1 = arith.constant 0 : i32
    return %c0_i32, %c0_i32_0 : i32, i32
  }
  func.func @transform_5(%arg0: i32) -> (i32, i32) {
    %c0_i32 = arith.constant 0 : i32
    %c0_i32_0 = arith.constant 0 : i32
    %c0_i32_1 = arith.constant 0 : i32
    return %c0_i32, %c0_i32_0 : i32, i32
  }
  func.func @transform_6(%arg0: i32) -> (i32, i32) {
    %c0_i32 = arith.constant 0 : i32
    %c0_i32_0 = arith.constant 0 : i32
    %c0_i32_1 = arith.constant 0 : i32
    return %c0_i32, %c0_i32_0 : i32, i32
  }
  func.func @transform_7(%arg0: i32) -> (i32, i32) {
    %c0_i32 = arith.constant 0 : i32
    %c0_i32_0 = arith.constant 0 : i32
    %c0_i32_1 = arith.constant 0 : i32
    return %c0_i32, %c0_i32_0 : i32, i32
  }
  func.func @transform_8(%arg0: i32) -> (i32, i32) {
    %c0_i32 = arith.constant 0 : i32
    %c0_i32_0 = arith.constant 0 : i32
    %c0_i32_1 = arith.constant 0 : i32
    return %c0_i32, %c0_i32_0 : i32, i32
  }
  func.func @transform_9(%arg0: i32) -> (i32, i32) {
    %c0_i32 = arith.constant 0 : i32
    %c0_i32_0 = arith.constant 0 : i32
    %c0_i32_1 = arith.constant 0 : i32
    return %c0_i32, %c0_i32_0 : i32, i32
  }
  func.func @transform_10(%arg0: i32) -> (i32, i32) {
    %c0_i32 = arith.constant 0 : i32
    %c0_i32_0 = arith.constant 0 : i32
    %c0_i32_1 = arith.constant 0 : i32
    return %c0_i32, %c0_i32_0 : i32, i32
  }
  func.func @transform_11(%arg0: i32) -> (i32, i32) {
    %c0_i32 = arith.constant 0 : i32
    %c0_i32_0 = arith.constant 0 : i32
    %c0_i32_1 = arith.constant 0 : i32
    return %c0_i32, %c0_i32_0 : i32, i32
  }
  func.func @transform_12(%arg0: i32) -> (i32, i32, i32) {
    %c0_i32 = arith.constant 0 : i32
    %c0_i32_0 = arith.constant 0 : i32
    %c0_i32_1 = arith.constant 0 : i32
    return %arg0, %c0_i32, %c0_i32_0 : i32, i32, i32
  }
}

</mosaic_0001>

<llo_original>
// kernel: tpu_custom_call.1
$region0: #{tpu_custom_call.1}
  #allocation0 [shape = 'u32[]', space=smem, size = 0x4, offset = 0x4, fixed_abs, tag = 'smem constant byte address 0x4 - core index']
  #allocation1 [shape = 'u32[144,128]{1,0:T(1,128)}', space=vmem, size = 0x12000, scoped, tag = 'internal scratch']
  %s0 = inlined_call_operand.vmem [shape: bf16[1,16,8], index: 0, kind: input, shape index: {}]
  %s1 = inlined_call_operand.vmem [shape: bf16[1,16,16], index: 1, kind: input, shape index: {}]
  %s2 = inlined_call_operand.vmem [shape: bf16[16,16], index: 2, kind: input, shape index: {}]
  %s3 = inlined_call_operand.hbm [shape: bf16[8,16], index: 3, kind: input, shape index: {}]
  %s4 = inlined_call_operand.vmem [shape: bf16[16,16], index: 4, kind: input, shape index: {}]
  %s5 = inlined_call_operand.hbm [shape: bf16[8,16], index: 5, kind: input, shape index: {}]
  %s6 = inlined_call_operand.vmem [shape: bf16[16,16], index: 6, kind: input, shape index: {}]
  %s7 = inlined_call_operand.hbm [shape: bf16[16,16], index: 7, kind: input, shape index: {}]
  %s8 = inlined_call_operand.vmem [shape: bf16[8,16], index: 8, kind: input, shape index: {}]
  %s9 = inlined_call_operand.vmem [shape: f32[1,16], index: 9, kind: input, shape index: {}]
  %s10 = inlined_call_operand.vmem [shape: f32[1,16], index: 10, kind: input, shape index: {}]
  %s11 = inlined_call_operand.vmem [shape: f32[1,16], index: 11, kind: input, shape index: {}]
  %s12 = inlined_call_operand.hbm [shape: f32[1,16,16], index: 12, kind: output, shape index: {}]
  %s13 = sld [smem:[#allocation0]]
  $region70: #{tpu_custom_call.1} parent=0
    _
  %s15 = ssub.s32 1, %s13
  %s16 = scalar_select 0, %s15, %s13
  $region1: #{tpu_custom_call.1} parent=0
    #allocation2 [shape = 'u8[2048]{0}', space=vmem, size = 0x800, scoped, tag = 'input window, operand 3, single buffered']
    #allocation3 [shape = 's32[1]{0}', space=sflag, size = 0x4, scoped, tag = 'scoped memory for tpu_custom_call.1']
    #allocation4 [shape = 's32[1]{0}', space=sflag, size = 0x4, scoped, tag = 'scoped memory for tpu_custom_call.1']
    #allocation5 [shape = 'u8[2048]{0}', space=vmem, size = 0x800, scoped, tag = 'input window, operand 5, single buffered']
    #allocation6 [shape = 's32[1]{0}', space=sflag, size = 0x4, scoped, tag = 'scoped memory for tpu_custom_call.1']
    #allocation7 [shape = 'u8[4096]{0}', space=vmem, size = 0x1000, scoped, tag = 'input window, operand 7, single buffered']
    #allocation8 [shape = 'u8[8192]{0}', space=vmem, size = 0x2000, scoped, tag = 'output window, operand 0, single buffered']
    %17 = vsyncpa [#allocation3], 0
    %18 = vsyncpa [#allocation6], 0
    %19 = vsyncpa [#allocation4], 0
    // Predicated region
    $region2: #{tpu_custom_call.1} parent=1 // pred_check
      _
    $region3: #{tpu_custom_call.1} parent=1 // pred_check_branch
      %21 = sbr.rel (0) target = $region5
    $region4: #{tpu_custom_call.1} parent=1 // pred_region
      _
    $region5: #{tpu_custom_call.1} parent=1 // pred_fallthru
      _
    // Predicated region
    $region6: #{tpu_custom_call.1} parent=1 // pred_check
      _
    $region7: #{tpu_custom_call.1} parent=1 // pred_check_branch
      %23 = sbr.rel (0) target = $region9
    $region8: #{tpu_custom_call.1} parent=1 // pred_region
      _
    $region9: #{tpu_custom_call.1} parent=1 // pred_fallthru
      _
    // Predicated region
    $region10: #{tpu_custom_call.1} parent=1 // pred_check
      _
    $region11: #{tpu_custom_call.1} parent=1 // pred_check_branch
      %25 = sbr.rel (0) target = $region13
    $region12: #{tpu_custom_call.1} parent=1 // pred_region
      _
    $region13: #{tpu_custom_call.1} parent=1 // pred_fallthru
      _
    // Predicated region
    $region14: #{tpu_custom_call.1} parent=1 // pred_check
      _
    $region15: #{tpu_custom_call.1} parent=1 // pred_check_branch
      %27 = sbr.rel (0) target = $region17
    $region16: #{tpu_custom_call.1} parent=1 // pred_region
      %s29 = ssub.s32 64, 64
      %30 = vsyncadd [#allocation3], %s29
      %s32 = sshll.u32 [#allocation2], 4
      %s33 = int_to_ptr.vmem [resolvable:$true] %s32
      %35 = dma.hbm_to_vmem [thread:$0]  %s3, 64, %s33, [#allocation3]
    $region17: #{tpu_custom_call.1} parent=1 // pred_fallthru
      _
    // Predicated region
    $region18: #{tpu_custom_call.1} parent=1 // pred_check
      _
    $region19: #{tpu_custom_call.1} parent=1 // pred_check_branch
      %37 = sbr.rel (0) target = $region21
    $region20: #{tpu_custom_call.1} parent=1 // pred_region
      _
    $region21: #{tpu_custom_call.1} parent=1 // pred_fallthru
      _
    // Predicated region
    $region22: #{tpu_custom_call.1} parent=1 // pred_check
      _
    $region23: #{tpu_custom_call.1} parent=1 // pred_check_branch
      %39 = sbr.rel (0) target = $region25
    $region24: #{tpu_custom_call.1} parent=1 // pred_region
      %s41 = ssub.s32 64, 64
      %42 = vsyncadd [#allocation6], %s41
      %s44 = sshll.u32 [#allocation5], 4
      %s45 = int_to_ptr.vmem [resolvable:$true] %s44
      %47 = dma.hbm_to_vmem [thread:$0]  %s5, 64, %s45, [#allocation6]
    $region25: #{tpu_custom_call.1} parent=1 // pred_fallthru
      _
    // Predicated region
    $region26: #{tpu_custom_call.1} parent=1 // pred_check
      _
    $region27: #{tpu_custom_call.1} parent=1 // pred_check_branch
      %49 = sbr.rel (0) target = $region29
    $region28: #{tpu_custom_call.1} parent=1 // pred_region
      _
    $region29: #{tpu_custom_call.1} parent=1 // pred_fallthru
      _
    // Predicated region
    $region30: #{tpu_custom_call.1} parent=1 // pred_check
      _
    $region31: #{tpu_custom_call.1} parent=1 // pred_check_branch
      %51 = sbr.rel (0) target = $region33
    $region32: #{tpu_custom_call.1} parent=1 // pred_region
      %s53 = ssub.s32 128, 128
      %54 = vsyncadd [#allocation6], %s53
      %s55 = sshll.u32 [#allocation7], 4
      %s56 = int_to_ptr.vmem [resolvable:$true] %s55
      %61 = dma.hbm_to_vmem [thread:$0]  %s7, 128, %s56, [#allocation6], 64, 64, 4
    $region33: #{tpu_custom_call.1} parent=1 // pred_fallthru
      _
    // Predicated region
    $region34: #{tpu_custom_call.1} parent=1 // pred_check
      _
    $region35: #{tpu_custom_call.1} parent=1 // pred_check_branch
      %63 = sbr.rel (0) target = $region37
    $region36: #{tpu_custom_call.1} parent=1 // pred_region
      _
    $region37: #{tpu_custom_call.1} parent=1 // pred_fallthru
      _
    // Predicated region
    $region38: #{tpu_custom_call.1} parent=1 // pred_check
      _
    $region39: #{tpu_custom_call.1} parent=1 // pred_check_branch
      %65 = sbr.rel (0) target = $region41
    $region40: #{tpu_custom_call.1} parent=1 // pred_region
      _
    $region41: #{tpu_custom_call.1} parent=1 // pred_fallthru
      _
    // Predicated region
    $region42: #{tpu_custom_call.1} parent=1 // pred_check
      _
    $region43: #{tpu_custom_call.1} parent=1 // pred_check_branch
      %67 = sbr.rel (0) target = $region45
    $region44: #{tpu_custom_call.1} parent=1 // pred_region
      _
    $region45: #{tpu_custom_call.1} parent=1 // pred_fallthru
      _
    // Predicated region
    $region46: #{tpu_custom_call.1} parent=1 // pred_check
      _
    $region47: #{tpu_custom_call.1} parent=1 // pred_check_branch
      %69 = sbr.rel (0) target = $region49
    $region48: #{tpu_custom_call.1} parent=1 // pred_region
      _
    $region49: #{tpu_custom_call.1} parent=1 // pred_fallthru
      _
    // Predicated region
    $region50: #{tpu_custom_call.1} parent=1 // pred_check
      _
    $region51: #{tpu_custom_call.1} parent=1 // pred_check_branch
      %71 = sbr.rel (0) target = $region53
    $region52: #{tpu_custom_call.1} parent=1 // pred_region
      %72 = dma.done [#allocation3], 64
    $region53: #{tpu_custom_call.1} parent=1 // pred_fallthru
      _
    // Predicated region
    $region54: #{tpu_custom_call.1} parent=1 // pred_check
      _
    $region55: #{tpu_custom_call.1} parent=1 // pred_check_branch
      %74 = sbr.rel (0) target = $region57
    $region56: #{tpu_custom_call.1} parent=1 // pred_region
      %75 = dma.done [#allocation6], 64
    $region57: #{tpu_custom_call.1} parent=1 // pred_fallthru
      _
    // Predicated region
    $region58: #{tpu_custom_call.1} parent=1 // pred_check
      _
    $region59: #{tpu_custom_call.1} parent=1 // pred_check_branch
      %77 = sbr.rel (0) target = $region61
    $region60: #{tpu_custom_call.1} parent=1 // pred_region
      %78 = dma.done [#allocation6], 128
    $region61: #{tpu_custom_call.1} parent=1 // pred_fallthru
      _
    %v80 = vld [vmem:[%s2] sm:$0xf]
    %v81 = vld [vmem:[%s2 + $0x4] sm:$0xf]
    %v82 = vld [vmem:[%s0] sm:$0xf]
    %v83 = vld [vmem:[%s0 + $0x4] sm:$0xf]
    %v84 = vld [vmem:[%s1] sm:$0xf]
    %v85 = vld [vmem:[%s1 + $0x4] sm:$0xf]
    %v88 = vunpack.c.l.b16 %v80
    %v89 = vunpack.c.l.b16 %v81
    %v90 = vpack.c.b16 %v89, %v88
    %v93 = vunpack.c.l.b16 %v82
    %v94 = vunpack.c.l.b16 %v83
    %v95 = vpack.c.b16 %v94, %v93
    %vm97 = vcmask 130048
    %v99 = vsel %vm97, %v90, 0
    %101 = vmatprep.subr.bf16.mxu0 0
    %102 = vmatpush1.bf16.msra.mxu0 %v95
    %103 = vmatprep.subr.bf16.mxu0 0
    %104 = vmatpush1.bf16.msra.mxu0 0
    %105 = vmatprep.subr.bf16.mxu0 0
    %106 = vmatpush1.bf16.msra.mxu0 0
    %107 = vmatprep.subr.bf16.mxu0 0
    %108 = vmatpush1.bf16.msra.mxu0 0
    %109 = vmatprep.subr.bf16.mxu0 0
    %110 = vmatpush1.bf16.msra.mxu0 0
    %111 = vmatprep.subr.bf16.mxu0 0
    %112 = vmatpush1.bf16.msra.mxu0 0
    %113 = vmatprep.subr.bf16.mxu0 0
    %114 = vmatpush1.bf16.msra.mxu0 0
    %115 = vmatprep.subr.bf16.mxu0 0
    %116 = vmatpush1.bf16.msra.mxu0 0
    %117 = vmatprep.subr.bf16.mxu0 0
    %118 = vmatpush1.bf16.msra.mxu0 0
    %119 = vmatprep.subr.bf16.mxu0 0
    %120 = vmatpush1.bf16.msra.mxu0 0
    %121 = vmatprep.subr.bf16.mxu0 0
    %122 = vmatpush1.bf16.msra.mxu0 0
    %123 = vmatprep.subr.bf16.mxu0 0
    %124 = vmatpush1.bf16.msra.mxu0 0
    %125 = vmatprep.subr.bf16.mxu0 0
    %126 = vmatpush1.bf16.msra.mxu0 0
    %127 = vmatprep.subr.bf16.mxu0 0
    %128 = vmatpush1.bf16.msra.mxu0 0
    %129 = vmatprep.subr.bf16.mxu0 0
    %130 = vmatpush1.bf16.msra.mxu0 0
    %131 = vmatprep.subr.bf16.mxu0 0
    %132 = vmatpush1.bf16.msra.mxu0 0
    %133 = vmatprep.mubr.bf16.mxu0 0
    %134 = vmatmul.mubr.bf16.gmra.mrb[0].mxu0 %v99
    %v135 = vpop.f32.mrb[0].mxu0
    %v136 = vadd.f32 0.0, %v135
    %v137 = vpop.f32.mrb[0].mxu0
    %v138 = vpop.f32.mrb[0].mxu0
    %v139 = vadd.f32 0.0, %v138
    %v140 = vpop.f32.mrb[0].mxu0
    %141 = vdwg.mxu0
    %v144 = vunpack.c.l.b16 %v84
    %v145 = vunpack.c.l.b16 %v85
    %v146 = vpack.c.b16 %v145, %v144
    %148 = vmatprep.subr.bf16.mxu0 0
    %149 = vmatpush1.bf16.msra.mxu0 %v146
    %150 = vmatprep.subr.bf16.mxu0 0
    %151 = vmatpush1.bf16.msra.mxu0 0
    %152 = vmatprep.subr.bf16.mxu0 0
    %153 = vmatpush1.bf16.msra.mxu0 0
    %154 = vmatprep.subr.bf16.mxu0 0
    %155 = vmatpush1.bf16.msra.mxu0 0
    %156 = vmatprep.subr.bf16.mxu0 0
    %157 = vmatpush1.bf16.msra.mxu0 0
    %158 = vmatprep.subr.bf16.mxu0 0
    %159 = vmatpush1.bf16.msra.mxu0 0
    %160 = vmatprep.subr.bf16.mxu0 0
    %161 = vmatpush1.bf16.msra.mxu0 0
    %162 = vmatprep.subr.bf16.mxu0 0
    %163 = vmatpush1.bf16.msra.mxu0 0
    %164 = vmatprep.subr.bf16.mxu0 0
    %165 = vmatpush1.bf16.msra.mxu0 0
    %166 = vmatprep.subr.bf16.mxu0 0
    %167 = vmatpush1.bf16.msra.mxu0 0
    %168 = vmatprep.subr.bf16.mxu0 0
    %169 = vmatpush1.bf16.msra.mxu0 0
    %170 = vmatprep.subr.bf16.mxu0 0
    %171 = vmatpush1.bf16.msra.mxu0 0
    %172 = vmatprep.subr.bf16.mxu0 0
    %173 = vmatpush1.bf16.msra.mxu0 0
    %174 = vmatprep.subr.bf16.mxu0 0
    %175 = vmatpush1.bf16.msra.mxu0 0
    %176 = vmatprep.subr.bf16.mxu0 0
    %177 = vmatpush1.bf16.msra.mxu0 0
    %178 = vmatprep.subr.bf16.mxu0 0
    %179 = vmatpush1.bf16.msra.mxu0 0
    %180 = vmatprep.mubr.bf16.mxu0 0
    %181 = vmatmul.mubr.bf16.gmra.mrb[0].mxu0 %v99
    %v182 = vpop.f32.mrb[0].mxu0
    %v183 = vadd.f32 0.0, %v182
    %v184 = vpop.f32.mrb[0].mxu0
    %v185 = vpop.f32.mrb[0].mxu0
    %v186 = vadd.f32 0.0, %v185
    %v187 = vpop.f32.mrb[0].mxu0
    %188 = vdwg.mxu0
    %v189 = vpack.c.bf16 %v139, %v136
    %v190 = vpack.c.bf16 %v186, %v183
    %v191 = vld [vmem:[#allocation2] sm:$0xf]
    %v192 = vld [vmem:[%s4] sm:$0xf]
    %v193 = vld [vmem:[%s4 + $0x4] sm:$0xf]
    %v196 = vunpack.c.l.b16 %v192
    %v197 = vunpack.c.l.b16 %v193
    %v198 = vpack.c.b16 %v197, %v196
    %v201 = vsel %vm97, %v190, 0
    %203 = vmatprep.subr.bf16.mxu0 0
    %204 = vmatpush1.bf16.msra.mxu0 %v198
    %205 = vmatprep.subr.bf16.mxu0 0
    %206 = vmatpush1.bf16.msra.mxu0 0
    %207 = vmatprep.subr.bf16.mxu0 0
    %208 = vmatpush1.bf16.msra.mxu0 0
    %209 = vmatprep.subr.bf16.mxu0 0
    %210 = vmatpush1.bf16.msra.mxu0 0
    %211 = vmatprep.subr.bf16.mxu0 0
    %212 = vmatpush1.bf16.msra.mxu0 0
    %213 = vmatprep.subr.bf16.mxu0 0
    %214 = vmatpush1.bf16.msra.mxu0 0
    %215 = vmatprep.subr.bf16.mxu0 0
    %216 = vmatpush1.bf16.msra.mxu0 0
    %217 = vmatprep.subr.bf16.mxu0 0
    %218 = vmatpush1.bf16.msra.mxu0 0
    %219 = vmatprep.subr.bf16.mxu0 0
    %220 = vmatpush1.bf16.msra.mxu0 0
    %221 = vmatprep.subr.bf16.mxu0 0
    %222 = vmatpush1.bf16.msra.mxu0 0
    %223 = vmatprep.subr.bf16.mxu0 0
    %224 = vmatpush1.bf16.msra.mxu0 0
    %225 = vmatprep.subr.bf16.mxu0 0
    %226 = vmatpush1.bf16.msra.mxu0 0
    %227 = vmatprep.subr.bf16.mxu0 0
    %228 = vmatpush1.bf16.msra.mxu0 0
    %229 = vmatprep.subr.bf16.mxu0 0
    %230 = vmatpush1.bf16.msra.mxu0 0
    %231 = vmatprep.subr.bf16.mxu0 0
    %232 = vmatpush1.bf16.msra.mxu0 0
    %233 = vmatprep.subr.bf16.mxu0 0
    %234 = vmatpush1.bf16.msra.mxu0 0
    %235 = vmatprep.mubr.bf16.mxu0 0
    %236 = vmatmul.mubr.bf16.gmra.mrb[0].mxu0 %v201
    %v237 = vpop.f32.mrb[0].mxu0
    %v238 = vadd.f32 0.0, %v237
    %v239 = vpop.f32.mrb[0].mxu0
    %v240 = vpop.f32.mrb[0].mxu0
    %v241 = vadd.f32 0.0, %v240
    %v242 = vpop.f32.mrb[0].mxu0
    %243 = vdwg.mxu0
    %vm244 = vcmask 64512
    %v246 = vsel %vm244, %v189, 0
    %vm248 = vcmask 1043456
    %v250 = vsel %vm248, %v191, 0
    %252 = vmatprep.subr.bf16.mxu0 0
    %253 = vmatpush1.bf16.msra.mxu0 %v250
    %254 = vmatprep.subr.bf16.mxu0 0
    %255 = vmatpush1.bf16.msra.mxu0 0
    %256 = vmatprep.subr.bf16.mxu0 0
    %257 = vmatpush1.bf16.msra.mxu0 0
    %258 = vmatprep.subr.bf16.mxu0 0
    %259 = vmatpush1.bf16.msra.mxu0 0
    %260 = vmatprep.subr.bf16.mxu0 0
    %261 = vmatpush1.bf16.msra.mxu0 0
    %262 = vmatprep.subr.bf16.mxu0 0
    %263 = vmatpush1.bf16.msra.mxu0 0
    %264 = vmatprep.subr.bf16.mxu0 0
    %265 = vmatpush1.bf16.msra.mxu0 0
    %266 = vmatprep.subr.bf16.mxu0 0
    %267 = vmatpush1.bf16.msra.mxu0 0
    %268 = vmatprep.subr.bf16.mxu0 0
    %269 = vmatpush1.bf16.msra.mxu0 0
    %270 = vmatprep.subr.bf16.mxu0 0
    %271 = vmatpush1.bf16.msra.mxu0 0
    %272 = vmatprep.subr.bf16.mxu0 0
    %273 = vmatpush1.bf16.msra.mxu0 0
    %274 = vmatprep.subr.bf16.mxu0 0
    %275 = vmatpush1.bf16.msra.mxu0 0
    %276 = vmatprep.subr.bf16.mxu0 0
    %277 = vmatpush1.bf16.msra.mxu0 0
    %278 = vmatprep.subr.bf16.mxu0 0
    %279 = vmatpush1.bf16.msra.mxu0 0
    %280 = vmatprep.subr.bf16.mxu0 0
    %281 = vmatpush1.bf16.msra.mxu0 0
    %282 = vmatprep.subr.bf16.mxu0 0
    %283 = vmatpush1.bf16.msra.mxu0 0
    %284 = vmatprep.mubr.bf16.mxu0 0
    %285 = vmatmul.mubr.bf16.gmra.mrb[0].mxu0 %v246
    %v286 = vpop.f32.mrb[0].mxu0
    %v287 = vadd.f32 %v238, %v286
    %v288 = vpop.f32.mrb[0].mxu0
    %v289 = vpop.f32.mrb[0].mxu0
    %v290 = vadd.f32 %v241, %v289
    %v291 = vpop.f32.mrb[0].mxu0
    %292 = vdwg.mxu0
    %v293 = vld [vmem:[%s9] sm:$0x1]
    %v295 = vlaneseq
    %v296 = vshrl.u32 %v295, 7
    %v297 = vsub.s32 0, %v296
    %v298 = vrot.slane %v293, %v297
    %v300 = vadd.f32 %v287, %v298
    %v301 = vadd.f32 %v290, %v298
    %v302 = vxor.u32 %v300, 2147483648
    %v303 = vxor.u32 %v301, 2147483648
    %v304 = vmul.f32 %v302, 1.442695
    %v305 = vpow.pop %v304
    %v306 = vmul.f32 %v303, 1.442695
    %v307 = vpow.pop %v306
    %v308 = vadd.f32 %v305, 1.0
    %v309 = vadd.f32 %v307, 1.0
    %v310 = vrcp.pop %v308
    %v311 = vmul.f32 1.0, %v310
    %v312 = vrcp.pop %v309
    %v313 = vmul.f32 1.0, %v312
    %v314 = vld [vmem:[#allocation5] sm:$0xf]
    %v315 = vld [vmem:[%s6] sm:$0xf]
    %v316 = vld [vmem:[%s6 + $0x4] sm:$0xf]
    %v319 = vunpack.c.l.b16 %v315
    %v320 = vunpack.c.l.b16 %v316
    %v321 = vpack.c.b16 %v320, %v319
    %323 = vmatprep.subr.bf16.mxu0 0
    %324 = vmatpush1.bf16.msra.mxu0 %v321
    %325 = vmatprep.subr.bf16.mxu0 0
    %326 = vmatpush1.bf16.msra.mxu0 0
    %327 = vmatprep.subr.bf16.mxu0 0
    %328 = vmatpush1.bf16.msra.mxu0 0
    %329 = vmatprep.subr.bf16.mxu0 0
    %330 = vmatpush1.bf16.msra.mxu0 0
    %331 = vmatprep.subr.bf16.mxu0 0
    %332 = vmatpush1.bf16.msra.mxu0 0
    %333 = vmatprep.subr.bf16.mxu0 0
    %334 = vmatpush1.bf16.msra.mxu0 0
    %335 = vmatprep.subr.bf16.mxu0 0
    %336 = vmatpush1.bf16.msra.mxu0 0
    %337 = vmatprep.subr.bf16.mxu0 0
    %338 = vmatpush1.bf16.msra.mxu0 0
    %339 = vmatprep.subr.bf16.mxu0 0
    %340 = vmatpush1.bf16.msra.mxu0 0
    %341 = vmatprep.subr.bf16.mxu0 0
    %342 = vmatpush1.bf16.msra.mxu0 0
    %343 = vmatprep.subr.bf16.mxu0 0
    %344 = vmatpush1.bf16.msra.mxu0 0
    %345 = vmatprep.subr.bf16.mxu0 0
    %346 = vmatpush1.bf16.msra.mxu0 0
    %347 = vmatprep.subr.bf16.mxu0 0
    %348 = vmatpush1.bf16.msra.mxu0 0
    %349 = vmatprep.subr.bf16.mxu0 0
    %350 = vmatpush1.bf16.msra.mxu0 0
    %351 = vmatprep.subr.bf16.mxu0 0
    %352 = vmatpush1.bf16.msra.mxu0 0
    %353 = vmatprep.subr.bf16.mxu0 0
    %354 = vmatpush1.bf16.msra.mxu0 0
    %355 = vmatprep.mubr.bf16.mxu0 0
    %356 = vmatmul.mubr.bf16.gmra.mrb[0].mxu0 %v201
    %v357 = vpop.f32.mrb[0].mxu0
    %v358 = vadd.f32 0.0, %v357
    %v359 = vpop.f32.mrb[0].mxu0
    %v360 = vpop.f32.mrb[0].mxu0
    %v361 = vadd.f32 0.0, %v360
    %v362 = vpop.f32.mrb[0].mxu0
    %363 = vdwg.mxu0
    %v365 = vsel %vm248, %v314, 0
    %367 = vmatprep.subr.bf16.mxu0 0
    %368 = vmatpush1.bf16.msra.mxu0 %v365
    %369 = vmatprep.subr.bf16.mxu0 0
    %370 = vmatpush1.bf16.msra.mxu0 0
    %371 = vmatprep.subr.bf16.mxu0 0
    %372 = vmatpush1.bf16.msra.mxu0 0
    %373 = vmatprep.subr.bf16.mxu0 0
    %374 = vmatpush1.bf16.msra.mxu0 0
    %375 = vmatprep.subr.bf16.mxu0 0
    %376 = vmatpush1.bf16.msra.mxu0 0
    %377 = vmatprep.subr.bf16.mxu0 0
    %378 = vmatpush1.bf16.msra.mxu0 0
    %379 = vmatprep.subr.bf16.mxu0 0
    %380 = vmatpush1.bf16.msra.mxu0 0
    %381 = vmatprep.subr.bf16.mxu0 0
    %382 = vmatpush1.bf16.msra.mxu0 0
    %383 = vmatprep.subr.bf16.mxu0 0
    %384 = vmatpush1.bf16.msra.mxu0 0
    %385 = vmatprep.subr.bf16.mxu0 0
    %386 = vmatpush1.bf16.msra.mxu0 0
    %387 = vmatprep.subr.bf16.mxu0 0
    %388 = vmatpush1.bf16.msra.mxu0 0
    %389 = vmatprep.subr.bf16.mxu0 0
    %390 = vmatpush1.bf16.msra.mxu0 0
    %391 = vmatprep.subr.bf16.mxu0 0
    %392 = vmatpush1.bf16.msra.mxu0 0
    %393 = vmatprep.subr.bf16.mxu0 0
    %394 = vmatpush1.bf16.msra.mxu0 0
    %395 = vmatprep.subr.bf16.mxu0 0
    %396 = vmatpush1.bf16.msra.mxu0 0
    %397 = vmatprep.subr.bf16.mxu0 0
    %398 = vmatpush1.bf16.msra.mxu0 0
    %399 = vmatprep.mubr.bf16.mxu0 0
    %400 = vmatmul.mubr.bf16.gmra.mrb[0].mxu0 %v246
    %v401 = vpop.f32.mrb[0].mxu0
    %v402 = vadd.f32 %v358, %v401
    %v403 = vpop.f32.mrb[0].mxu0
    %v404 = vpop.f32.mrb[0].mxu0
    %v405 = vadd.f32 %v361, %v404
    %v406 = vpop.f32.mrb[0].mxu0
    %407 = vdwg.mxu0
    %v408 = vld [vmem:[%s10] sm:$0x1]
    %v410 = vlaneseq
    %v411 = vshrl.u32 %v410, 7
    %v412 = vsub.s32 0, %v411
    %v413 = vrot.slane %v408, %v412
    %v415 = vadd.f32 %v402, %v413
    %v416 = vadd.f32 %v405, %v413
    %v417 = vxor.u32 %v415, 2147483648
    %v418 = vxor.u32 %v416, 2147483648
    %v419 = vmul.f32 %v417, 1.442695
    %v420 = vpow.pop %v419
    %v421 = vmul.f32 %v418, 1.442695
    %v422 = vpow.pop %v421
    %v423 = vadd.f32 %v420, 1.0
    %v424 = vadd.f32 %v422, 1.0
    %v425 = vrcp.pop %v423
    %v426 = vmul.f32 1.0, %v425
    %v427 = vrcp.pop %v424
    %v428 = vmul.f32 1.0, %v427
    %v429 = vunpack.c.l.bf16 %v84
    %v430 = vunpack.c.l.bf16 %v85
    %v431 = vmul.f32 %v426, %v429
    %v432 = vmul.f32 %v428, %v430
    %v433 = vpack.c.bf16 %v432, %v431
    %434 = vmatprep.subr.bf16.mxu0 0
    %435 = vmatpush1.bf16.msra.mxu0 %v433
    %436 = vmatprep.subr.bf16.mxu0 0
    %437 = vmatpush1.bf16.msra.mxu0 0
    %438 = vmatprep.subr.bf16.mxu0 0
    %439 = vmatpush1.bf16.msra.mxu0 0
    %440 = vmatprep.subr.bf16.mxu0 0
    %441 = vmatpush1.bf16.msra.mxu0 0
    %442 = vmatprep.subr.bf16.mxu0 0
    %443 = vmatpush1.bf16.msra.mxu0 0
    %444 = vmatprep.subr.bf16.mxu0 0
    %445 = vmatpush1.bf16.msra.mxu0 0
    %446 = vmatprep.subr.bf16.mxu0 0
    %447 = vmatpush1.bf16.msra.mxu0 0
    %448 = vmatprep.subr.bf16.mxu0 0
    %449 = vmatpush1.bf16.msra.mxu0 0
    %450 = vmatprep.subr.bf16.mxu0 0
    %451 = vmatpush1.bf16.msra.mxu0 0
    %452 = vmatprep.subr.bf16.mxu0 0
    %453 = vmatpush1.bf16.msra.mxu0 0
    %454 = vmatprep.subr.bf16.mxu0 0
    %455 = vmatpush1.bf16.msra.mxu0 0
    %456 = vmatprep.subr.bf16.mxu0 0
    %457 = vmatpush1.bf16.msra.mxu0 0
    %458 = vmatprep.subr.bf16.mxu0 0
    %459 = vmatpush1.bf16.msra.mxu0 0
    %460 = vmatprep.subr.bf16.mxu0 0
    %461 = vmatpush1.bf16.msra.mxu0 0
    %462 = vmatprep.subr.bf16.mxu0 0
    %463 = vmatpush1.bf16.msra.mxu0 0
    %464 = vmatprep.subr.bf16.mxu0 0
    %465 = vmatpush1.bf16.msra.mxu0 0
    %466 = vmatprep.mubr.bf16.mxu0 0
    %467 = vmatmul.mubr.bf16.gmra.mrb[0].mxu0 %v99
    %v468 = vpop.f32.mrb[0].mxu0
    %v469 = vadd.f32 0.0, %v468
    %v470 = vpop.f32.mrb[0].mxu0
    %v471 = vpop.f32.mrb[0].mxu0
    %v472 = vadd.f32 0.0, %v471
    %v473 = vpop.f32.mrb[0].mxu0
    %474 = vdwg.mxu0
    %v475 = vpack.c.bf16 %v472, %v469
    %v476 = vld [vmem:[#allocation7] sm:$0xf]
    %v477 = vld [vmem:[#allocation7 + $0x4] sm:$0xf]
    %v478 = vld [vmem:[%s8] sm:$0xf]
    %v480 = vsel %vm248, %v478, 0
    %482 = vmatprep.subr.bf16.mxu0 0
    %483 = vmatpush1.bf16.msra.mxu0 %v480
    %484 = vmatprep.subr.bf16.mxu0 0
    %485 = vmatpush1.bf16.msra.mxu0 0
    %486 = vmatprep.subr.bf16.mxu0 0
    %487 = vmatpush1.bf16.msra.mxu0 0
    %488 = vmatprep.subr.bf16.mxu0 0
    %489 = vmatpush1.bf16.msra.mxu0 0
    %490 = vmatprep.subr.bf16.mxu0 0
    %491 = vmatpush1.bf16.msra.mxu0 0
    %492 = vmatprep.subr.bf16.mxu0 0
    %493 = vmatpush1.bf16.msra.mxu0 0
    %494 = vmatprep.subr.bf16.mxu0 0
    %495 = vmatpush1.bf16.msra.mxu0 0
    %496 = vmatprep.subr.bf16.mxu0 0
    %497 = vmatpush1.bf16.msra.mxu0 0
    %498 = vmatprep.subr.bf16.mxu0 0
    %499 = vmatpush1.bf16.msra.mxu0 0
    %500 = vmatprep.subr.bf16.mxu0 0
    %501 = vmatpush1.bf16.msra.mxu0 0
    %502 = vmatprep.subr.bf16.mxu0 0
    %503 = vmatpush1.bf16.msra.mxu0 0
    %504 = vmatprep.subr.bf16.mxu0 0
    %505 = vmatpush1.bf16.msra.mxu0 0
    %506 = vmatprep.subr.bf16.mxu0 0
    %507 = vmatpush1.bf16.msra.mxu0 0
    %508 = vmatprep.subr.bf16.mxu0 0
    %509 = vmatpush1.bf16.msra.mxu0 0
    %510 = vmatprep.subr.bf16.mxu0 0
    %511 = vmatpush1.bf16.msra.mxu0 0
    %512 = vmatprep.subr.bf16.mxu0 0
    %513 = vmatpush1.bf16.msra.mxu0 0
    %514 = vmatprep.mubr.bf16.mxu0 0
    %515 = vmatmul.mubr.bf16.gmra.mrb[0].mxu0 %v246
    %v516 = vpop.f32.mrb[0].mxu0
    %v517 = vadd.f32 0.0, %v516
    %v518 = vpop.f32.mrb[0].mxu0
    %v519 = vpop.f32.mrb[0].mxu0
    %v520 = vadd.f32 0.0, %v519
    %v521 = vpop.f32.mrb[0].mxu0
    %522 = vdwg.mxu0
    %v525 = vunpack.c.l.b16 %v476
    %v526 = vunpack.c.l.b16 %v477
    %v527 = vpack.c.b16 %v526, %v525
    %v530 = vsel %vm97, %v475, 0
    %532 = vmatprep.subr.bf16.mxu0 0
    %533 = vmatpush1.bf16.msra.mxu0 %v527
    %534 = vmatprep.subr.bf16.mxu0 0
    %535 = vmatpush1.bf16.msra.mxu0 0
    %536 = vmatprep.subr.bf16.mxu0 0
    %537 = vmatpush1.bf16.msra.mxu0 0
    %538 = vmatprep.subr.bf16.mxu0 0
    %539 = vmatpush1.bf16.msra.mxu0 0
    %540 = vmatprep.subr.bf16.mxu0 0
    %541 = vmatpush1.bf16.msra.mxu0 0
    %542 = vmatprep.subr.bf16.mxu0 0
    %543 = vmatpush1.bf16.msra.mxu0 0
    %544 = vmatprep.subr.bf16.mxu0 0
    %545 = vmatpush1.bf16.msra.mxu0 0
    %546 = vmatprep.subr.bf16.mxu0 0
    %547 = vmatpush1.bf16.msra.mxu0 0
    %548 = vmatprep.subr.bf16.mxu0 0
    %549 = vmatpush1.bf16.msra.mxu0 0
    %550 = vmatprep.subr.bf16.mxu0 0
    %551 = vmatpush1.bf16.msra.mxu0 0
    %552 = vmatprep.subr.bf16.mxu0 0
    %553 = vmatpush1.bf16.msra.mxu0 0
    %554 = vmatprep.subr.bf16.mxu0 0
    %555 = vmatpush1.bf16.msra.mxu0 0
    %556 = vmatprep.subr.bf16.mxu0 0
    %557 = vmatpush1.bf16.msra.mxu0 0
    %558 = vmatprep.subr.bf16.mxu0 0
    %559 = vmatpush1.bf16.msra.mxu0 0
    %560 = vmatprep.subr.bf16.mxu0 0
    %561 = vmatpush1.bf16.msra.mxu0 0
    %562 = vmatprep.subr.bf16.mxu0 0
    %563 = vmatpush1.bf16.msra.mxu0 0
    %564 = vmatprep.mubr.bf16.mxu0 0
    %565 = vmatmul.mubr.bf16.gmra.mrb[0].mxu0 %v530
    %v566 = vpop.f32.mrb[0].mxu0
    %v567 = vadd.f32 %v517, %v566
    %v568 = vpop.f32.mrb[0].mxu0
    %v569 = vpop.f32.mrb[0].mxu0
    %v570 = vadd.f32 %v520, %v569
    %v571 = vpop.f32.mrb[0].mxu0
    %572 = vdwg.mxu0
    %v573 = vld [vmem:[%s11] sm:$0x1]
    %v575 = vlaneseq
    %v576 = vshrl.u32 %v575, 7
    %v577 = vsub.s32 0, %v576
    %v578 = vrot.slane %v573, %v577
    %v580 = vadd.f32 %v567, %v578
    %v581 = vadd.f32 %v570, %v578
    %v582 = vtanh.pop %v580
    %v583 = vtanh.pop %v581
    %v584 = vsub.f32 1.0, %v311
    %v585 = vsub.f32 1.0, %v313
    %v586 = vmul.f32 %v584, %v429
    %v587 = vmul.f32 %v585, %v430
    %v588 = vmul.f32 %v311, %v582
    %v589 = vmul.f32 %v313, %v583
    %v590 = vadd.f32 %v586, %v588
    %v591 = vadd.f32 %v587, %v589
    %592 = vst.msk [vmem:[#allocation8] sm:$0xff] %vm97, %v590
    %593 = vst.msk [vmem:[#allocation8 + $0x8] sm:$0xff] %vm97, %v591
    // Predicated region
    $region62: #{tpu_custom_call.1} parent=1 // pred_check
      _
    $region63: #{tpu_custom_call.1} parent=1 // pred_check_branch
      %595 = sbr.rel (0) target = $region65
    $region64: #{tpu_custom_call.1} parent=1 // pred_region
      %s597 = ssub.s32 256, 256
      %598 = vsyncadd [#allocation4], %s597
      %s599 = sshll.u32 [#allocation8], 4
      %s600 = int_to_ptr.vmem [resolvable:$true] %s599
      %605 = dma.vmem_to_hbm [thread:$0]  %s600, 256, %s12, [#allocation4], 128, 128, 8
    $region65: #{tpu_custom_call.1} parent=1 // pred_fallthru
      _
    // Predicated region
    $region66: #{tpu_custom_call.1} parent=1 // pred_check
      _
    $region67: #{tpu_custom_call.1} parent=1 // pred_check_branch
      %607 = sbr.rel (0) target = $region69
    $region68: #{tpu_custom_call.1} parent=1 // pred_region
      %608 = dma.done [#allocation4], 256
    $region69: #{tpu_custom_call.1} parent=1 // pred_fallthru
      _
    %609 = vsyncpa [#allocation3], 1
    %610 = vsyncpa [#allocation6], 1
    %611 = vsyncpa [#allocation4], 1

</llo_original>
